<compile_context>
chip_gen: v7x
topology: tpu7x:2x2x1
jax: 0.10.0
libtpu: 0.0.40
codegen_flags: <defaults>
</compile_context>

<pallas_src>
import functools
import math

import jax
import jax.numpy as jnp
from jax.experimental import pallas as pl
from jax.experimental.pallas import tpu as pltpu

_LANES = 128


def _gcn_kernel(x_ref, w_ref, att_ref, b_ref, o_ref, *, att_first):
    # x_ref:   (B, N, F_in)        full input (all batches)
    # w_ref:   (F_in, F_out_pad)   padded weight
    # att_ref: (rows, N)           row-chunk of att (rows == N when row_splits=1)
    # b_ref:   (1, F_out_pad)      padded bias
    # o_ref:   (B, rows, F_out_pad)
    x = x_ref[...]
    w = w_ref[...]
    att = att_ref[...]
    b = b_ref[...]

    B, N, _ = x.shape
    rows = att.shape[0]

    if att_first:
        # (att @ x[b]) per batch, then one merged (B*rows, F_in) @ (F_in, F_out) matmul.
        ax = jnp.concatenate(
            [jnp.dot(att, x[i], preferred_element_type=jnp.float32)
             for i in range(B)],
            axis=0)                                           # (B*rows, F_in)
        out = jnp.dot(ax, w, preferred_element_type=jnp.float32)  # (B*rows, F_out_pad)
        out = out.reshape(B, rows, -1)
    else:
        # Merged (B*N, F_in) @ W first, then att chunk per batch.
        sup = jnp.dot(x.reshape(B * N, -1), w,
                      preferred_element_type=jnp.float32)      # (B*N, F_out_pad)
        sup = sup.reshape(B, N, -1)
        out = jnp.concatenate(
            [jnp.dot(att, sup[i], preferred_element_type=jnp.float32)[None]
             for i in range(B)],
            axis=0)                                            # (B, rows, F_out_pad)

    o_ref[...] = (out + b).astype(o_ref.dtype)


def graph_convolution(x, weight, att, bias=None, *, row_splits=1,
                      use_bf16=False):
    """x: (B, N, F_in); weight: (F_in, F_out); att: (N, N); bias: (F_out,) or None.

    row_splits: number of "parallel" grid steps over the att rows (use 2 on v7x
                so both TensorCores get work; 1 elsewhere).
    use_bf16:   cast x/weight/att to bf16 (f32 accumulation) — faster MXU path
                on v5e/v6e when model tolerance allows.
    """
    B, N, F_in = x.shape
    F_out = weight.shape[1]
    assert att.shape == (N, N)
    assert N % row_splits == 0
    rows = N // row_splits

    # Pad F_out to a lane-dense multiple of 128.
    F_out_p = ((F_out + _LANES - 1) // _LANES) * _LANES
    pad = F_out_p - F_out

    op_dtype = jnp.bfloat16 if use_bf16 else jnp.float32
    x_in = x.astype(op_dtype)
    att_in = att.astype(op_dtype)
    w_p = jnp.pad(weight.astype(op_dtype), ((0, 0), (0, pad)))
    if bias is None:
        b_p = jnp.zeros((1, F_out_p), jnp.float32)
    else:
        b_p = jnp.pad(bias.reshape(1, F_out).astype(jnp.float32),
                      ((0, 0), (0, pad)))

    # Associativity: fewer MACs by doing the cheaper contraction first.
    att_first = F_in < F_out

    kernel = functools.partial(_gcn_kernel, att_first=att_first)

    out_p = pl.pallas_call(
        kernel,
        out_shape=jax.ShapeDtypeStruct((B, N, F_out_p), jnp.float32),
        grid_spec=pltpu.PrefetchScalarGridSpec(
            num_scalar_prefetch=0,
            grid=(row_splits,),
            in_specs=[
                pl.BlockSpec((B, N, F_in), lambda r: (0, 0, 0)),      # x (full)
                pl.BlockSpec((F_in, F_out_p), lambda r: (0, 0)),      # weight
                pl.BlockSpec((rows, N), lambda r: (r, 0)),            # att row chunk
                pl.BlockSpec((1, F_out_p), lambda r: (0, 0)),         # bias
            ],
            out_specs=pl.BlockSpec((B, rows, F_out_p), lambda r: (0, r, 0)),
        ),
        compiler_params=pltpu.CompilerParams(
            dimension_semantics=("parallel",)),
    )(x_in, w_p, att_in, b_p)

    return out_p[..., :F_out] if pad else out_p


if __name__ == "__main__":
    # Small, deterministic shapes consistent with the module defaults.
    B = 2            # batch
    node_n = 48      # number of graph nodes (module default)
    in_features = 32
    out_features = 64

    key = jax.random.PRNGKey(0)
    k_x, k_w, k_a, k_b = jax.random.split(key, 4)

    # Deterministic init mirroring reset_parameters(): U(-stdv, stdv),
    # stdv = 1 / sqrt(out_features).
    stdv = 1.0 / math.sqrt(out_features)
    weight = jax.random.uniform(k_w, (in_features, out_features),
                                jnp.float32, -stdv, stdv)
    att = jax.random.uniform(k_a, (node_n, node_n), jnp.float32, -stdv, stdv)
    bias = jax.random.uniform(k_b, (out_features,), jnp.float32, -stdv, stdv)

    x = jax.random.normal(k_x, (B, node_n, in_features), jnp.float32)

    # Reference in plain JAX (same semantics as the PyTorch forward).
    ref = jnp.einsum("nm,bmf->bnf", att, x @ weight) + bias

    # Default path: single grid step (v5e/v6e sweet spot).
    out1 = jax.block_until_ready(graph_convolution(x, weight, att, bias))
    assert out1.shape == (B, node_n, out_features)
    assert jnp.allclose(out1, ref, atol=1e-4, rtol=1e-4)

    # Two-way row split ("parallel") — keeps both v7x TensorCores busy.
    out2 = jax.block_until_ready(
        graph_convolution(x, weight, att, bias, row_splits=2))
    assert out2.shape == (B, node_n, out_features)
    assert jnp.allclose(out2, ref, atol=1e-4, rtol=1e-4)

    print("KERNEL_OK")
</pallas_src>

<mosaic_0001>
module attributes {stable_mosaic.version = 11 : i64} {
  func.func @_gcn_kernel(%arg0: i32, %arg1: memref<2x48x32xf32, #tpu.memory_space<vmem>>, %arg2: memref<32x128xf32, #tpu.memory_space<vmem>>, %arg3: memref<48x48xf32, #tpu.memory_space<vmem>>, %arg4: memref<1x128xf32, #tpu.memory_space<vmem>>, %arg5: memref<2x48x128xf32, #tpu.memory_space<vmem>>) attributes {dimension_semantics = [#tpu.dimension_semantics<parallel>], iteration_bounds = array<i64: 1>, scalar_prefetch = 0 : i64, scratch_operands = 0 : i64, tpu.core_type = #tpu.core_type<tc>, window_params = [{pipeline_mode = #tpu.pipeline_mode<synchronous>, transform_indices = @transform_0, window_bounds = array<i64: 2, 48, 32>}, {pipeline_mode = #tpu.pipeline_mode<synchronous>, transform_indices = @transform_1, window_bounds = array<i64: 32, 128>}, {transform_indices = @transform_2, window_bounds = array<i64: 48, 48>}, {pipeline_mode = #tpu.pipeline_mode<synchronous>, transform_indices = @transform_3, window_bounds = array<i64: 1, 128>}, {transform_indices = @transform_4, window_bounds = array<i64: 2, 48, 128>}]} {
    %c0 = arith.constant 0 : index
    %c0_0 = arith.constant 0 : index
    %c0_1 = arith.constant 0 : index
    %0 = vector.load %arg1[%c0, %c0_0, %c0_1] : memref<2x48x32xf32, #tpu.memory_space<vmem>>, vector<2x48x32xf32>
    %c0_2 = arith.constant 0 : index
    %c0_3 = arith.constant 0 : index
    %1 = vector.load %arg2[%c0_2, %c0_3] : memref<32x128xf32, #tpu.memory_space<vmem>>, vector<32x128xf32>
    %c0_4 = arith.constant 0 : index
    %c0_5 = arith.constant 0 : index
    %2 = vector.load %arg3[%c0_4, %c0_5] : memref<48x48xf32, #tpu.memory_space<vmem>>, vector<48x48xf32>
    %c0_6 = arith.constant 0 : index
    %c0_7 = arith.constant 0 : index
    %3 = vector.load %arg4[%c0_6, %c0_7] : memref<1x128xf32, #tpu.memory_space<vmem>>, vector<1x128xf32>
    %4 = vector.extract_strided_slice %0 {offsets = [0, 0, 0], sizes = [1, 48, 32], strides = [1, 1, 1]} : vector<2x48x32xf32> to vector<1x48x32xf32>
    %5 = vector.shape_cast %4 : vector<1x48x32xf32> to vector<48x32xf32>
    %cst = arith.constant dense<0.000000e+00> : vector<48x32xf32>
    %6 = tpu.matmul %2, %5, %cst {dimension_numbers = #tpu.dot_dimension_numbers<[1], [0], [0], [1], [0, 0, 1, 1], [], []>} : vector<48x48xf32>, vector<48x32xf32>, vector<48x32xf32> -> vector<48x32xf32>
    %7 = vector.extract_strided_slice %0 {offsets = [1, 0, 0], sizes = [1, 48, 32], strides = [1, 1, 1]} : vector<2x48x32xf32> to vector<1x48x32xf32>
    %8 = vector.shape_cast %7 : vector<1x48x32xf32> to vector<48x32xf32>
    %cst_8 = arith.constant dense<0.000000e+00> : vector<48x32xf32>
    %9 = tpu.matmul %2, %8, %cst_8 {dimension_numbers = #tpu.dot_dimension_numbers<[1], [0], [0], [1], [0, 0, 1, 1], [], []>} : vector<48x48xf32>, vector<48x32xf32>, vector<48x32xf32> -> vector<48x32xf32>
    %10 = tpu.concatenate %6, %9 in 0 : vector<48x32xf32>, vector<48x32xf32> -> vector<96x32xf32>
    %cst_9 = arith.constant dense<0.000000e+00> : vector<96x128xf32>
    %11 = tpu.matmul %10, %1, %cst_9 {dimension_numbers = #tpu.dot_dimension_numbers<[1], [0], [0], [1], [0, 0, 1, 1], [], []>} : vector<96x32xf32>, vector<32x128xf32>, vector<96x128xf32> -> vector<96x128xf32>
    %12 = vector.shape_cast %11 : vector<96x128xf32> to vector<2x48x128xf32>
    %13 = vector.shape_cast %3 : vector<1x128xf32> to vector<1x1x128xf32>
    %14 = vector.broadcast %13 : vector<1x1x128xf32> to vector<2x48x128xf32>
    %15 = arith.addf %12, %14 : vector<2x48x128xf32>
    %c0_10 = arith.constant 0 : index
    %c0_11 = arith.constant 0 : index
    %c0_12 = arith.constant 0 : index
    %16 = vector.load %arg5[%c0_10, %c0_11, %c0_12] : memref<2x48x128xf32, #tpu.memory_space<vmem>>, vector<2x48x128xf32>
    tpu.vector_store %arg5[%c0_10, %c0_11, %c0_12], %15 {strides = array<i32>} : memref<2x48x128xf32, #tpu.memory_space<vmem>>, vector<2x48x128xf32>,
    return
  }
  func.func @transform_0(%arg0: i32) -> (i32, i32, i32) {
    %c0_i32 = arith.constant 0 : i32
    %c0_i32_0 = arith.constant 0 : i32
    %c0_i32_1 = arith.constant 0 : i32
    %c0_i32_2 = arith.constant 0 : i32
    return %c0_i32, %c0_i32_0, %c0_i32_1 : i32, i32, i32
  }
  func.func @transform_1(%arg0: i32) -> (i32, i32) {
    %c0_i32 = arith.constant 0 : i32
    %c0_i32_0 = arith.constant 0 : i32
    %c0_i32_1 = arith.constant 0 : i32
    return %c0_i32, %c0_i32_0 : i32, i32
  }
  func.func @transform_2(%arg0: i32) -> (i32, i32) {
    %c0_i32 = arith.constant 0 : i32
    %c0_i32_0 = arith.constant 0 : i32
    return %arg0, %c0_i32 : i32, i32
  }
  func.func @transform_3(%arg0: i32) -> (i32, i32) {
    %c0_i32 = arith.constant 0 : i32
    %c0_i32_0 = arith.constant 0 : i32
    %c0_i32_1 = arith.constant 0 : i32
    return %c0_i32, %c0_i32_0 : i32, i32
  }
  func.func @transform_4(%arg0: i32) -> (i32, i32, i32) {
    %c0_i32 = arith.constant 0 : i32
    %c0_i32_0 = arith.constant 0 : i32
    %c0_i32_1 = arith.constant 0 : i32
    return %c0_i32, %arg0, %c0_i32_0 : i32, i32, i32
  }
}

</mosaic_0001>

<llo_original>
// kernel: tpu_custom_call.1
$region0: #{tpu_custom_call.1}
  #allocation0 [shape = 'u32[]', space=smem, size = 0x4, offset = 0x4, fixed_abs, tag = 'smem constant byte address 0x4 - core index']
  #allocation1 [shape = 'u32[144,128]{1,0:T(1,128)}', space=vmem, size = 0x12000, scoped, tag = 'internal scratch']
  %s0 = inlined_call_operand.vmem [shape: f32[2,48,32], index: 0, kind: input, shape index: {}]
  %s1 = inlined_call_operand.vmem [shape: f32[32,128], index: 1, kind: input, shape index: {}]
  %s2 = inlined_call_operand.vmem [shape: f32[48,48], index: 2, kind: input, shape index: {}]
  %s3 = inlined_call_operand.vmem [shape: f32[1,128], index: 3, kind: input, shape index: {}]
  %s4 = inlined_call_operand.hbm [shape: f32[2,48,128], index: 4, kind: output, shape index: {}]
  %s5 = sld [smem:[#allocation0]]
  $region26: #{tpu_custom_call.1} parent=0
    _
  %s7 = ssub.s32 1, %s5
  %s8 = scalar_select 0, %s7, %s5
  $region1: #{tpu_custom_call.1} parent=0
    #allocation2 [shape = 'u8[49152]{0}', space=vmem, size = 0xc000, scoped, tag = 'output window, operand 0, single buffered']
    #allocation3 [shape = 's32[1]{0}', space=sflag, size = 0x4, scoped, tag = 'scoped memory for tpu_custom_call.1']
    %9 = vsyncpa [#allocation3], 0
    // Predicated region
    $region2: #{tpu_custom_call.1} parent=1 // pred_check
      _
    $region3: #{tpu_custom_call.1} parent=1 // pred_check_branch
      %11 = sbr.rel (0) target = $region5
    $region4: #{tpu_custom_call.1} parent=1 // pred_region
      _
    $region5: #{tpu_custom_call.1} parent=1 // pred_fallthru
      _
    // Predicated region
    $region6: #{tpu_custom_call.1} parent=1 // pred_check
      _
    $region7: #{tpu_custom_call.1} parent=1 // pred_check_branch
      %13 = sbr.rel (0) target = $region9
    $region8: #{tpu_custom_call.1} parent=1 // pred_region
      _
    $region9: #{tpu_custom_call.1} parent=1 // pred_fallthru
      _
    // Predicated region
    $region10: #{tpu_custom_call.1} parent=1 // pred_check
      _
    $region11: #{tpu_custom_call.1} parent=1 // pred_check_branch
      %15 = sbr.rel (0) target = $region13
    $region12: #{tpu_custom_call.1} parent=1 // pred_region
      _
    $region13: #{tpu_custom_call.1} parent=1 // pred_fallthru
      _
    // Predicated region
    $region14: #{tpu_custom_call.1} parent=1 // pred_check
      _
    $region15: #{tpu_custom_call.1} parent=1 // pred_check_branch
      %17 = sbr.rel (0) target = $region17
    $region16: #{tpu_custom_call.1} parent=1 // pred_region
      _
    $region17: #{tpu_custom_call.1} parent=1 // pred_fallthru
      _
    %v18 = vld [vmem:[%s0] sm:$0xff]
    %v19 = vld [vmem:[%s0 + $0x8] sm:$0xff]
    %v20 = vld [vmem:[%s0 + $0x10] sm:$0xff]
    %v21 = vld [vmem:[%s0 + $0x18] sm:$0xff]
    %v22 = vld [vmem:[%s0 + $0x20] sm:$0xff]
    %v23 = vld [vmem:[%s0 + $0x28] sm:$0xff]
    %v24 = vld [vmem:[%s0 + $0x30] sm:$0xff]
    %v25 = vld [vmem:[%s0 + $0x38] sm:$0xff]
    %v26 = vld [vmem:[%s0 + $0x40] sm:$0xff]
    %v27 = vld [vmem:[%s0 + $0x48] sm:$0xff]
    %v28 = vld [vmem:[%s0 + $0x50] sm:$0xff]
    %v29 = vld [vmem:[%s0 + $0x58] sm:$0xff]
    %v30 = vld [vmem:[%s1] sm:$0xff]
    %v31 = vld [vmem:[%s1 + $0x8] sm:$0xff]
    %v32 = vld [vmem:[%s1 + $0x10] sm:$0xff]
    %v33 = vld [vmem:[%s1 + $0x18] sm:$0xff]
    %v34 = vld [vmem:[%s2] sm:$0xff]
    %v35 = vld [vmem:[%s2 + $0x8] sm:$0xff]
    %v36 = vld [vmem:[%s2 + $0x10] sm:$0xff]
    %v37 = vld [vmem:[%s2 + $0x18] sm:$0xff]
    %v38 = vld [vmem:[%s2 + $0x20] sm:$0xff]
    %v39 = vld [vmem:[%s2 + $0x28] sm:$0xff]
    %v40 = vld [vmem:[%s3] sm:$0x1]
    %vm41 = vcmask 392192
    %v43 = vsel %vm41, %v34, 0
    %v46 = vsel %vm41, %v35, 0
    %v49 = vsel %vm41, %v36, 0
    %v52 = vsel %vm41, %v37, 0
    %v55 = vsel %vm41, %v38, 0
    %v58 = vsel %vm41, %v39, 0
    %60 = vmatprep.subr.mxu0 0.0
    %61 = vmatpush1.msra.mxu0 %v18
    %62 = vmatprep.subr.mxu0 0.0
    %63 = vmatpush1.msra.mxu0 %v19
    %64 = vmatprep.subr.mxu0 0.0
    %65 = vmatpush1.msra.mxu0 %v20
    %66 = vmatprep.subr.mxu0 0.0
    %67 = vmatpush1.msra.mxu0 %v21
    %68 = vmatprep.subr.mxu0 0.0
    %69 = vmatpush1.msra.mxu0 %v22
    %70 = vmatprep.subr.mxu0 0.0
    %71 = vmatpush1.msra.mxu0 %v23
    %72 = vmatprep.subr.mxu0 0.0
    %73 = vmatpush1.msra.mxu0 0.0
    %74 = vmatprep.subr.mxu0 0.0
    %75 = vmatpush1.msra.mxu0 0.0
    %76 = vmatprep.subr.mxu0 0.0
    %77 = vmatpush1.msra.mxu0 0.0
    %78 = vmatprep.subr.mxu0 0.0
    %79 = vmatpush1.msra.mxu0 0.0
    %80 = vmatprep.subr.mxu0 0.0
    %81 = vmatpush1.msra.mxu0 0.0
    %82 = vmatprep.subr.mxu0 0.0
    %83 = vmatpush1.msra.mxu0 0.0
    %84 = vmatprep.subr.mxu0 0.0
    %85 = vmatpush1.msra.mxu0 0.0
    %86 = vmatprep.subr.mxu0 0.0
    %87 = vmatpush1.msra.mxu0 0.0
    %88 = vmatprep.subr.mxu0 0.0
    %89 = vmatpush1.msra.mxu0 0.0
    %90 = vmatprep.subr.mxu0 0.0
    %91 = vmatpush1.msra.mxu0 0.0
    %92 = vmatprep.subr.mxu0 0.0
    %93 = vmatpush1.msra.mxu0 0.0
    %94 = vmatprep.subr.mxu0 0.0
    %95 = vmatpush1.msra.mxu0 0.0
    %96 = vmatprep.subr.mxu0 0.0
    %97 = vmatpush1.msra.mxu0 0.0
    %98 = vmatprep.subr.mxu0 0.0
    %99 = vmatpush1.msra.mxu0 0.0
    %100 = vmatprep.subr.mxu0 0.0
    %101 = vmatpush1.msra.mxu0 0.0
    %102 = vmatprep.subr.mxu0 0.0
    %103 = vmatpush1.msra.mxu0 0.0
    %104 = vmatprep.subr.mxu0 0.0
    %105 = vmatpush1.msra.mxu0 0.0
    %106 = vmatprep.subr.mxu0 0.0
    %107 = vmatpush1.msra.mxu0 0.0
    %108 = vmatprep.subr.mxu0 0.0
    %109 = vmatpush1.msra.mxu0 0.0
    %110 = vmatprep.subr.mxu0 0.0
    %111 = vmatpush1.msra.mxu0 0.0
    %112 = vmatprep.subr.mxu0 0.0
    %113 = vmatpush1.msra.mxu0 0.0
    %114 = vmatprep.subr.mxu0 0.0
    %115 = vmatpush1.msra.mxu0 0.0
    %116 = vmatprep.subr.mxu0 0.0
    %117 = vmatpush1.msra.mxu0 0.0
    %118 = vmatprep.subr.mxu0 0.0
    %119 = vmatpush1.msra.mxu0 0.0
    %120 = vmatprep.subr.mxu0 0.0
    %121 = vmatpush1.msra.mxu0 0.0
    %122 = vmatprep.subr.mxu0 0.0
    %123 = vmatpush1.msra.mxu0 0.0
    %124 = vmatprep.mubr.f32.mxu0 0.0
    %125 = vmatmul.mubr.f32.gmra.mrb[0].mxu0 %v43
    %v126 = vpop.f32.mrb[0].mxu0
    %v127 = vadd.f32 0.0, %v126
    %v128 = vpop.f32.mrb[0].mxu0
    %129 = vmatprep.mubr.f32.mxu0 0.0
    %130 = vmatmul.mubr.f32.gmra.mrb[0].mxu0 %v46
    %v131 = vpop.f32.mrb[0].mxu0
    %v132 = vadd.f32 0.0, %v131
    %v133 = vpop.f32.mrb[0].mxu0
    %134 = vmatprep.mubr.f32.mxu0 0.0
    %135 = vmatmul.mubr.f32.gmra.mrb[0].mxu0 %v49
    %v136 = vpop.f32.mrb[0].mxu0
    %v137 = vadd.f32 0.0, %v136
    %v138 = vpop.f32.mrb[0].mxu0
    %139 = vmatprep.mubr.f32.mxu0 0.0
    %140 = vmatmul.mubr.f32.gmra.mrb[0].mxu0 %v52
    %v141 = vpop.f32.mrb[0].mxu0
    %v142 = vadd.f32 0.0, %v141
    %v143 = vpop.f32.mrb[0].mxu0
    %144 = vmatprep.mubr.f32.mxu0 0.0
    %145 = vmatmul.mubr.f32.gmra.mrb[0].mxu0 %v55
    %v146 = vpop.f32.mrb[0].mxu0
    %v147 = vadd.f32 0.0, %v146
    %v148 = vpop.f32.mrb[0].mxu0
    %149 = vmatprep.mubr.f32.mxu0 0.0
    %150 = vmatmul.mubr.f32.gmra.mrb[0].mxu0 %v58
    %v151 = vpop.f32.mrb[0].mxu0
    %v152 = vadd.f32 0.0, %v151
    %v153 = vpop.f32.mrb[0].mxu0
    %154 = vdwg.mxu0
    %155 = vmatprep.subr.mxu0 0.0
    %156 = vmatpush1.msra.mxu0 %v24
    %157 = vmatprep.subr.mxu0 0.0
    %158 = vmatpush1.msra.mxu0 %v25
    %159 = vmatprep.subr.mxu0 0.0
    %160 = vmatpush1.msra.mxu0 %v26
    %161 = vmatprep.subr.mxu0 0.0
    %162 = vmatpush1.msra.mxu0 %v27
    %163 = vmatprep.subr.mxu0 0.0
    %164 = vmatpush1.msra.mxu0 %v28
    %165 = vmatprep.subr.mxu0 0.0
    %166 = vmatpush1.msra.mxu0 %v29
    %167 = vmatprep.subr.mxu0 0.0
    %168 = vmatpush1.msra.mxu0 0.0
    %169 = vmatprep.subr.mxu0 0.0
    %170 = vmatpush1.msra.mxu0 0.0
    %171 = vmatprep.subr.mxu0 0.0
    %172 = vmatpush1.msra.mxu0 0.0
    %173 = vmatprep.subr.mxu0 0.0
    %174 = vmatpush1.msra.mxu0 0.0
    %175 = vmatprep.subr.mxu0 0.0
    %176 = vmatpush1.msra.mxu0 0.0
    %177 = vmatprep.subr.mxu0 0.0
    %178 = vmatpush1.msra.mxu0 0.0
    %179 = vmatprep.subr.mxu0 0.0
    %180 = vmatpush1.msra.mxu0 0.0
    %181 = vmatprep.subr.mxu0 0.0
    %182 = vmatpush1.msra.mxu0 0.0
    %183 = vmatprep.subr.mxu0 0.0
    %184 = vmatpush1.msra.mxu0 0.0
    %185 = vmatprep.subr.mxu0 0.0
    %186 = vmatpush1.msra.mxu0 0.0
    %187 = vmatprep.subr.mxu0 0.0
    %188 = vmatpush1.msra.mxu0 0.0
    %189 = vmatprep.subr.mxu0 0.0
    %190 = vmatpush1.msra.mxu0 0.0
    %191 = vmatprep.subr.mxu0 0.0
    %192 = vmatpush1.msra.mxu0 0.0
    %193 = vmatprep.subr.mxu0 0.0
    %194 = vmatpush1.msra.mxu0 0.0
    %195 = vmatprep.subr.mxu0 0.0
    %196 = vmatpush1.msra.mxu0 0.0
    %197 = vmatprep.subr.mxu0 0.0
    %198 = vmatpush1.msra.mxu0 0.0
    %199 = vmatprep.subr.mxu0 0.0
    %200 = vmatpush1.msra.mxu0 0.0
    %201 = vmatprep.subr.mxu0 0.0
    %202 = vmatpush1.msra.mxu0 0.0
    %203 = vmatprep.subr.mxu0 0.0
    %204 = vmatpush1.msra.mxu0 0.0
    %205 = vmatprep.subr.mxu0 0.0
    %206 = vmatpush1.msra.mxu0 0.0
    %207 = vmatprep.subr.mxu0 0.0
    %208 = vmatpush1.msra.mxu0 0.0
    %209 = vmatprep.subr.mxu0 0.0
    %210 = vmatpush1.msra.mxu0 0.0
    %211 = vmatprep.subr.mxu0 0.0
    %212 = vmatpush1.msra.mxu0 0.0
    %213 = vmatprep.subr.mxu0 0.0
    %214 = vmatpush1.msra.mxu0 0.0
    %215 = vmatprep.subr.mxu0 0.0
    %216 = vmatpush1.msra.mxu0 0.0
    %217 = vmatprep.subr.mxu0 0.0
    %218 = vmatpush1.msra.mxu0 0.0
    %219 = vmatprep.mubr.f32.mxu0 0.0
    %220 = vmatmul.mubr.f32.gmra.mrb[0].mxu0 %v43
    %v221 = vpop.f32.mrb[0].mxu0
    %v222 = vadd.f32 0.0, %v221
    %v223 = vpop.f32.mrb[0].mxu0
    %224 = vmatprep.mubr.f32.mxu0 0.0
    %225 = vmatmul.mubr.f32.gmra.mrb[0].mxu0 %v46
    %v226 = vpop.f32.mrb[0].mxu0
    %v227 = vadd.f32 0.0, %v226
    %v228 = vpop.f32.mrb[0].mxu0
    %229 = vmatprep.mubr.f32.mxu0 0.0
    %230 = vmatmul.mubr.f32.gmra.mrb[0].mxu0 %v49
    %v231 = vpop.f32.mrb[0].mxu0
    %v232 = vadd.f32 0.0, %v231
    %v233 = vpop.f32.mrb[0].mxu0
    %234 = vmatprep.mubr.f32.mxu0 0.0
    %235 = vmatmul.mubr.f32.gmra.mrb[0].mxu0 %v52
    %v236 = vpop.f32.mrb[0].mxu0
    %v237 = vadd.f32 0.0, %v236
    %v238 = vpop.f32.mrb[0].mxu0
    %239 = vmatprep.mubr.f32.mxu0 0.0
    %240 = vmatmul.mubr.f32.gmra.mrb[0].mxu0 %v55
    %v241 = vpop.f32.mrb[0].mxu0
    %v242 = vadd.f32 0.0, %v241
    %v243 = vpop.f32.mrb[0].mxu0
    %244 = vmatprep.mubr.f32.mxu0 0.0
    %245 = vmatmul.mubr.f32.gmra.mrb[0].mxu0 %v58
    %v246 = vpop.f32.mrb[0].mxu0
    %v247 = vadd.f32 0.0, %v246
    %v248 = vpop.f32.mrb[0].mxu0
    %249 = vdwg.mxu0
    %vm250 = vcmask 261120
    %v252 = vsel %vm250, %v127, 0
    %v255 = vsel %vm250, %v132, 0
    %v258 = vsel %vm250, %v137, 0
    %v261 = vsel %vm250, %v142, 0
    %v264 = vsel %vm250, %v147, 0
    %v267 = vsel %vm250, %v152, 0
    %v270 = vsel %vm250, %v222, 0
    %v273 = vsel %vm250, %v227, 0
    %v276 = vsel %vm250, %v232, 0
    %v279 = vsel %vm250, %v237, 0
    %v282 = vsel %vm250, %v242, 0
    %v285 = vsel %vm250, %v247, 0
    %287 = vmatprep.subr.mxu0 0.0
    %288 = vmatpush1.msra.mxu0 %v30
    %289 = vmatprep.subr.mxu0 0.0
    %290 = vmatpush1.msra.mxu0 %v31
    %291 = vmatprep.subr.mxu0 0.0
    %292 = vmatpush1.msra.mxu0 %v32
    %293 = vmatprep.subr.mxu0 0.0
    %294 = vmatpush1.msra.mxu0 %v33
    %295 = vmatprep.subr.mxu0 0.0
    %296 = vmatpush1.msra.mxu0 0.0
    %297 = vmatprep.subr.mxu0 0.0
    %298 = vmatpush1.msra.mxu0 0.0
    %299 = vmatprep.subr.mxu0 0.0
    %300 = vmatpush1.msra.mxu0 0.0
    %301 = vmatprep.subr.mxu0 0.0
    %302 = vmatpush1.msra.mxu0 0.0
    %303 = vmatprep.subr.mxu0 0.0
    %304 = vmatpush1.msra.mxu0 0.0
    %305 = vmatprep.subr.mxu0 0.0
    %306 = vmatpush1.msra.mxu0 0.0
    %307 = vmatprep.subr.mxu0 0.0
    %308 = vmatpush1.msra.mxu0 0.0
    %309 = vmatprep.subr.mxu0 0.0
    %310 = vmatpush1.msra.mxu0 0.0
    %311 = vmatprep.subr.mxu0 0.0
    %312 = vmatpush1.msra.mxu0 0.0
    %313 = vmatprep.subr.mxu0 0.0
    %314 = vmatpush1.msra.mxu0 0.0
    %315 = vmatprep.subr.mxu0 0.0
    %316 = vmatpush1.msra.mxu0 0.0
    %317 = vmatprep.subr.mxu0 0.0
    %318 = vmatpush1.msra.mxu0 0.0
    %319 = vmatprep.subr.mxu0 0.0
    %320 = vmatpush1.msra.mxu0 0.0
    %321 = vmatprep.subr.mxu0 0.0
    %322 = vmatpush1.msra.mxu0 0.0
    %323 = vmatprep.subr.mxu0 0.0
    %324 = vmatpush1.msra.mxu0 0.0
    %325 = vmatprep.subr.mxu0 0.0
    %326 = vmatpush1.msra.mxu0 0.0
    %327 = vmatprep.subr.mxu0 0.0
    %328 = vmatpush1.msra.mxu0 0.0
    %329 = vmatprep.subr.mxu0 0.0
    %330 = vmatpush1.msra.mxu0 0.0
    %331 = vmatprep.subr.mxu0 0.0
    %332 = vmatpush1.msra.mxu0 0.0
    %333 = vmatprep.subr.mxu0 0.0
    %334 = vmatpush1.msra.mxu0 0.0
    %335 = vmatprep.subr.mxu0 0.0
    %336 = vmatpush1.msra.mxu0 0.0
    %337 = vmatprep.subr.mxu0 0.0
    %338 = vmatpush1.msra.mxu0 0.0
    %339 = vmatprep.subr.mxu0 0.0
    %340 = vmatpush1.msra.mxu0 0.0
    %341 = vmatprep.subr.mxu0 0.0
    %342 = vmatpush1.msra.mxu0 0.0
    %343 = vmatprep.subr.mxu0 0.0
    %344 = vmatpush1.msra.mxu0 0.0
    %345 = vmatprep.subr.mxu0 0.0
    %346 = vmatpush1.msra.mxu0 0.0
    %347 = vmatprep.subr.mxu0 0.0
    %348 = vmatpush1.msra.mxu0 0.0
    %349 = vmatprep.subr.mxu0 0.0
    %350 = vmatpush1.msra.mxu0 0.0
    %351 = vmatprep.mubr.f32.mxu0 0.0
    %352 = vmatmul.mubr.f32.gmra.mrb[0].mxu0 %v252
    %v353 = vpop.f32.mrb[0].mxu0
    %v354 = vadd.f32 0.0, %v353
    %v355 = vpop.f32.mrb[0].mxu0
    %356 = vmatprep.mubr.f32.mxu0 0.0
    %357 = vmatmul.mubr.f32.gmra.mrb[0].mxu0 %v255
    %v358 = vpop.f32.mrb[0].mxu0
    %v359 = vadd.f32 0.0, %v358
    %v360 = vpop.f32.mrb[0].mxu0
    %361 = vmatprep.mubr.f32.mxu0 0.0
    %362 = vmatmul.mubr.f32.gmra.mrb[0].mxu0 %v258
    %v363 = vpop.f32.mrb[0].mxu0
    %v364 = vadd.f32 0.0, %v363
    %v365 = vpop.f32.mrb[0].mxu0
    %366 = vmatprep.mubr.f32.mxu0 0.0
    %367 = vmatmul.mubr.f32.gmra.mrb[0].mxu0 %v261
    %v368 = vpop.f32.mrb[0].mxu0
    %v369 = vadd.f32 0.0, %v368
    %v370 = vpop.f32.mrb[0].mxu0
    %371 = vmatprep.mubr.f32.mxu0 0.0
    %372 = vmatmul.mubr.f32.gmra.mrb[0].mxu0 %v264
    %v373 = vpop.f32.mrb[0].mxu0
    %v374 = vadd.f32 0.0, %v373
    %v375 = vpop.f32.mrb[0].mxu0
    %376 = vmatprep.mubr.f32.mxu0 0.0
    %377 = vmatmul.mubr.f32.gmra.mrb[0].mxu0 %v267
    %v378 = vpop.f32.mrb[0].mxu0
    %v379 = vadd.f32 0.0, %v378
    %v380 = vpop.f32.mrb[0].mxu0
    %381 = vmatprep.mubr.f32.mxu0 0.0
    %382 = vmatmul.mubr.f32.gmra.mrb[0].mxu0 %v270
    %v383 = vpop.f32.mrb[0].mxu0
    %v384 = vadd.f32 0.0, %v383
    %v385 = vpop.f32.mrb[0].mxu0
    %386 = vmatprep.mubr.f32.mxu0 0.0
    %387 = vmatmul.mubr.f32.gmra.mrb[0].mxu0 %v273
    %v388 = vpop.f32.mrb[0].mxu0
    %v389 = vadd.f32 0.0, %v388
    %v390 = vpop.f32.mrb[0].mxu0
    %391 = vmatprep.mubr.f32.mxu0 0.0
    %392 = vmatmul.mubr.f32.gmra.mrb[0].mxu0 %v276
    %v393 = vpop.f32.mrb[0].mxu0
    %v394 = vadd.f32 0.0, %v393
    %v395 = vpop.f32.mrb[0].mxu0
    %396 = vmatprep.mubr.f32.mxu0 0.0
    %397 = vmatmul.mubr.f32.gmra.mrb[0].mxu0 %v279
    %v398 = vpop.f32.mrb[0].mxu0
    %v399 = vadd.f32 0.0, %v398
    %v400 = vpop.f32.mrb[0].mxu0
    %401 = vmatprep.mubr.f32.mxu0 0.0
    %402 = vmatmul.mubr.f32.gmra.mrb[0].mxu0 %v282
    %v403 = vpop.f32.mrb[0].mxu0
    %v404 = vadd.f32 0.0, %v403
    %v405 = vpop.f32.mrb[0].mxu0
    %406 = vmatprep.mubr.f32.mxu0 0.0
    %407 = vmatmul.mubr.f32.gmra.mrb[0].mxu0 %v285
    %v408 = vpop.f32.mrb[0].mxu0
    %v409 = vadd.f32 0.0, %v408
    %v410 = vpop.f32.mrb[0].mxu0
    %411 = vdwg.mxu0
    %v413 = vlaneseq
    %v414 = vshrl.u32 %v413, 7
    %v415 = vsub.s32 0, %v414
    %v416 = vrot.slane %v40, %v415
    %v418 = vadd.f32 %v354, %v416
    %v419 = vadd.f32 %v359, %v416
    %v420 = vadd.f32 %v364, %v416
    %v421 = vadd.f32 %v369, %v416
    %v422 = vadd.f32 %v374, %v416
    %v423 = vadd.f32 %v379, %v416
    %v424 = vadd.f32 %v384, %v416
    %v425 = vadd.f32 %v389, %v416
    %v426 = vadd.f32 %v394, %v416
    %v427 = vadd.f32 %v399, %v416
    %v428 = vadd.f32 %v404, %v416
    %v429 = vadd.f32 %v409, %v416
    %430 = vst [vmem:[#allocation2] sm:$0xff] %v418
    %431 = vst [vmem:[#allocation2 + $0x8] sm:$0xff] %v419
    %432 = vst [vmem:[#allocation2 + $0x10] sm:$0xff] %v420
    %433 = vst [vmem:[#allocation2 + $0x18] sm:$0xff] %v421
    %434 = vst [vmem:[#allocation2 + $0x20] sm:$0xff] %v422
    %435 = vst [vmem:[#allocation2 + $0x28] sm:$0xff] %v423
    %436 = vst [vmem:[#allocation2 + $0x30] sm:$0xff] %v424
    %437 = vst [vmem:[#allocation2 + $0x38] sm:$0xff] %v425
    %438 = vst [vmem:[#allocation2 + $0x40] sm:$0xff] %v426
    %439 = vst [vmem:[#allocation2 + $0x48] sm:$0xff] %v427
    %440 = vst [vmem:[#allocation2 + $0x50] sm:$0xff] %v428
    %441 = vst [vmem:[#allocation2 + $0x58] sm:$0xff] %v429
    // Predicated region
    $region18: #{tpu_custom_call.1} parent=1 // pred_check
      _
    $region19: #{tpu_custom_call.1} parent=1 // pred_check_branch
      %443 = sbr.rel (0) target = $region21
    $region20: #{tpu_custom_call.1} parent=1 // pred_region
      %s445 = ssub.s32 1536, 1536
      %446 = vsyncadd [#allocation3], %s445
      %s447 = sshll.u32 [#allocation2], 4
      %s448 = int_to_ptr.vmem [resolvable:$true] %s447
      %453 = dma.vmem_to_hbm [thread:$0]  %s448, 1536, %s4, [#allocation3], 128, 128, 8
    $region21: #{tpu_custom_call.1} parent=1 // pred_fallthru
      _
    // Predicated region
    $region22: #{tpu_custom_call.1} parent=1 // pred_check
      _
    $region23: #{tpu_custom_call.1} parent=1 // pred_check_branch
      %455 = sbr.rel (0) target = $region25
    $region24: #{tpu_custom_call.1} parent=1 // pred_region
      %456 = dma.done [#allocation3], 1536
    $region25: #{tpu_custom_call.1} parent=1 // pred_fallthru
      _
    %457 = vsyncpa [#allocation3], 1

</llo_original>
